<compile_context>
chip_gen: v7x
topology: tpu7x:2x2x1
jax: 0.10.0
libtpu: 0.0.40
codegen_flags: <defaults>
</compile_context>

<pallas_src>
import jax
import jax.numpy as jnp
from jax.experimental import pallas as pl
from jax.experimental.pallas import tpu as pltpu


def _round_up(x, m):
    return (x + m - 1) // m * m


# Per-generation VMEM budget: ~3/4 of physical VMEM, capped at 100 MiB.
try:
    _VMEM_CAP = int(pltpu.get_tpu_info().vmem_capacity_bytes)
except Exception:
    _VMEM_CAP = 128 * 1024 * 1024
_VMEM_LIMIT = int(max(min(_VMEM_CAP * 3 // 4, 100 * 1024 * 1024),
                      32 * 1024 * 1024))


# ----------------------------------------------------------------------------
# Pallas matmul kernels: C[M, N] = A[M, K] @ W[K, N]; bf16 operands, f32 acc.
# ----------------------------------------------------------------------------
def _mm_oneshot_kernel(a_ref, w_ref, o_ref):
    # Single K block: no scratch, no init/copy passes.
    o_ref[...] = jnp.dot(a_ref[...], w_ref[...],
                         preferred_element_type=jnp.float32).astype(o_ref.dtype)


def _mm_accum_out_kernel(a_ref, w_ref, o_ref):
    # Multi K block, f32 output: accumulate directly into the resident o_ref.
    @pl.when(pl.program_id(2) == 0)
    def _():
        o_ref[...] = jnp.zeros_like(o_ref)

    o_ref[...] += jnp.dot(a_ref[...], w_ref[...],
                          preferred_element_type=jnp.float32)


def _mm_accum_scratch_kernel(a_ref, w_ref, o_ref, acc_ref):
    # Multi K block, non-f32 output: f32 scratch accumulator, cast on last k.
    k = pl.program_id(2)

    @pl.when(k == 0)
    def _():
        acc_ref[...] = jnp.zeros_like(acc_ref)

    acc_ref[...] += jnp.dot(a_ref[...], w_ref[...],
                            preferred_element_type=jnp.float32)

    @pl.when(k == pl.num_programs(2) - 1)
    def _():
        o_ref[...] = acc_ref[...].astype(o_ref.dtype)


def pallas_matmul(a, w, out_dtype=jnp.float32):
    """a: [M, K], w: [K, N] -> [M, N] in out_dtype. bf16 operands, f32 acc."""
    M, K = a.shape
    K2, N = w.shape
    assert K == K2
    a = a.astype(jnp.bfloat16)
    w = w.astype(jnp.bfloat16)
    out_itemsize = jnp.dtype(out_dtype).itemsize

    # Lane-dense K and N (multiples of 128).
    Kp = _round_up(K, 128)
    tk = Kp if Kp <= 2048 else 2048
    Kp = _round_up(Kp, tk)

    Np = _round_up(N, 128)
    if Np <= 1024:
        tn = Np
    else:
        tn = 128
        for cand in (1024, 512, 256):
            if Np % cand == 0:
                tn = cand
                break

    # tm: largest tile that fits the per-generation VMEM budget
    # (double-buffered A + W + out), rounded for bf16 sublane packing.
    budget = max(_VMEM_LIMIT - (8 << 20), 16 << 20)
    w_bytes = 2 * tk * tn * 2
    tm = 16
    for cand in (2048, 1024, 512, 256, 128, 64, 32, 16):
        if 2 * cand * tk * 2 + 2 * cand * tn * out_itemsize + w_bytes <= budget:
            tm = cand
            break
    tm = min(tm, _round_up(M, 256) if M >= 256 else _round_up(M, 16))
    Mp = _round_up(M, tm)

    if (Mp, Kp) != (M, K):
        a = jnp.pad(a, ((0, Mp - M), (0, Kp - K)))
    if (Kp, Np) != (K, N):
        w = jnp.pad(w, ((0, Kp - K), (0, Np - N)))

    nk = Kp // tk
    if nk == 1:
        kernel, scratch = _mm_oneshot_kernel, []
    elif jnp.dtype(out_dtype) == jnp.dtype(jnp.float32):
        kernel, scratch = _mm_accum_out_kernel, []
    else:
        kernel, scratch = _mm_accum_scratch_kernel, [pltpu.VMEM((tm, tn), jnp.float32)]

    out = pl.pallas_call(
        kernel,
        out_shape=jax.ShapeDtypeStruct((Mp, Np), out_dtype),
        grid_spec=pltpu.PrefetchScalarGridSpec(
            num_scalar_prefetch=0,
            grid=(Mp // tm, Np // tn, nk),
            in_specs=[
                pl.BlockSpec((tm, tk), lambda i, j, k: (i, k)),
                pl.BlockSpec((tk, tn), lambda i, j, k: (k, j)),
            ],
            out_specs=pl.BlockSpec((tm, tn), lambda i, j, k: (i, j)),
            scratch_shapes=scratch,
        ),
        compiler_params=pltpu.CompilerParams(
            dimension_semantics=("parallel", "parallel", "arbitrary"),
            vmem_limit_bytes=_VMEM_LIMIT,
        ),
    )(a, w)
    if (Mp, Np) != (M, N):
        out = out[:M, :N]
    return out


# ----------------------------------------------------------------------------
# Conv / Deconv layers built on the matmul kernel (layout plumbing in XLA).
# ----------------------------------------------------------------------------
def _affine_act(x, scale, shift, act):
    if scale is not None:
        x = x * scale + shift
    if act == "leaky_relu":
        x = jnp.where(x >= 0, x, 0.2 * x)
    elif act == "relu":
        x = jnp.maximum(x, 0.0)
    return x


def pack_conv_w(w):
    """[Cout, Cin, 4, 4] -> bf16 [4*Cin, 4*Cout]; rows (a,b,ci), cols (u,v,co)."""
    cout, cin = w.shape[0], w.shape[1]
    return (w.reshape(cout, cin, 2, 2, 2, 2)      # [co, ci, u, a, v, b]
              .transpose(3, 5, 1, 2, 4, 0)        # [a, b, ci, u, v, co]
              .reshape(4 * cin, 4 * cout)
              .astype(jnp.bfloat16))


def pack_deconv_w(w):
    """[Cin, Cout, 4, 4] -> bf16 [Cin, 16*Cout]; cols (kh, kw, co)."""
    cin, cout = w.shape[0], w.shape[1]
    return w.transpose(0, 2, 3, 1).reshape(cin, 16 * cout).astype(jnp.bfloat16)


def conv4x4_s2(x, w2, b, *, scale=None, shift=None, pre_act=None):
    """PyTorch Conv2d(k=4, s=2, p=1) on NHWC x.  The producer's BatchNorm
    (scale/shift) and this layer's pre-activation are fused into the operand
    build; one Pallas matmul; bf16 intermediate; f32 raw (pre-BN) output."""
    N, H, W, Cin = x.shape
    cout = w2.shape[1] // 4
    Ho, Wo = H // 2, W // 2

    y = _affine_act(x, scale, shift, pre_act).astype(jnp.bfloat16)
    yp = jnp.pad(y, ((0, 0), (1, 1), (1, 1), (0, 0)))
    s = yp.reshape(N, Ho + 1, 2, Wo + 1, 2, Cin).transpose(0, 1, 3, 2, 4, 5)
    a_mat = s.reshape(N * (Ho + 1) * (Wo + 1), 4 * Cin)

    t = pallas_matmul(a_mat, w2, out_dtype=jnp.bfloat16)
    t = t.reshape(N, Ho + 1, Wo + 1, 2, 2, cout)
    out = (t[:, :Ho, :Wo, 0, 0].astype(jnp.float32)
           + t[:, :Ho, 1:, 0, 1]
           + t[:, 1:, :Wo, 1, 0]
           + t[:, 1:, 1:, 1, 1]) + b
    return out


# (row/col offset, kernel tap) pairs contributing to output phase 0 / 1.
_DECONV_TAPS = {0: ((0, 1), (-1, 3)), 1: ((0, 2), (1, 0))}


def deconv4x4_s2(x, w2, b, *, post_tanh=False):
    """PyTorch ConvTranspose2d(k=4, s=2, p=1) on NHWC x (already activated).
    Single matmul on the undilated input + fused col2im overlap-add and
    sub-pixel interleave.  Returns f32 [N, 2H, 2W, Cout]."""
    N, H, W, Cin = x.shape
    cout = w2.shape[1] // 16

    a_mat = x.astype(jnp.bfloat16).reshape(N * H * W, Cin)
    t = pallas_matmul(a_mat, w2, out_dtype=jnp.bfloat16).reshape(N, H, W, 4, 4, cout)
    tp = jnp.pad(t, ((0, 0), (1, 1), (1, 1), (0, 0), (0, 0), (0, 0)))

    phases = []
    for r in (0, 1):
        for s_ in (0, 1):
            acc = None
            for dh, kh in _DECONV_TAPS[r]:
                for dw, kw in _DECONV_TAPS[s_]:
                    term = tp[:, 1 + dh:1 + dh + H, 1 + dw:1 + dw + W, kh, kw, :]
                    term = term.astype(jnp.float32)
                    acc = term if acc is None else acc + term
            phases.append(acc + b)

    out = jnp.stack(phases, axis=3)                        # [N, H, W, (r, s), Cout]
    out = (out.reshape(N, H, W, 2, 2, cout)
              .transpose(0, 1, 3, 2, 4, 5)
              .reshape(N, 2 * H, 2 * W, cout))
    if post_tanh:
        out = jnp.tanh(out)
    return out


def bn_fold(x_raw, gamma, beta, eps=1e-5):
    """Training-mode BatchNorm2d (batch stats, biased var) folded to a
    per-channel (scale, shift) applied by the consumer.  x_raw: f32 NHWC."""
    mean = jnp.mean(x_raw, axis=(0, 1, 2))
    var = jnp.var(x_raw, axis=(0, 1, 2))
    scale = gamma * jax.lax.rsqrt(var + eps)
    shift = beta - mean * scale
    return scale, shift


# ----------------------------------------------------------------------------
# Generator parameters + forward
# ----------------------------------------------------------------------------
def init_generator_params(key, input_dim, nf, output_dim, std=0.02):
    conv_io = [(input_dim, nf), (nf, 2 * nf), (2 * nf, 4 * nf), (4 * nf, 8 * nf),
               (8 * nf, 8 * nf), (8 * nf, 8 * nf), (8 * nf, 8 * nf), (8 * nf, 8 * nf)]
    deconv_io = [(8 * nf, 8 * nf), (16 * nf, 8 * nf), (16 * nf, 8 * nf),
                 (16 * nf, 8 * nf), (16 * nf, 4 * nf), (8 * nf, 2 * nf),
                 (4 * nf, nf), (2 * nf, output_dim)]
    params = {"conv": [], "conv_bn": [], "deconv": [], "deconv_bn": []}
    keys = jax.random.split(key, 32)
    k = 0
    for ci, co in conv_io:
        w = std * jax.random.normal(keys[k], (co, ci, 4, 4), jnp.float32); k += 1
        b = std * jax.random.normal(keys[k], (co,), jnp.float32); k += 1
        params["conv"].append((w, b))
    for ci, co in conv_io[:7]:                 # conv1..conv7 have BatchNorm
        params["conv_bn"].append((jnp.ones((co,), jnp.float32),
                                  jnp.zeros((co,), jnp.float32)))
    for ci, co in deconv_io:
        w = std * jax.random.normal(keys[k], (ci, co, 4, 4), jnp.float32); k += 1
        b = std * jax.random.normal(keys[k], (co,), jnp.float32); k += 1
        params["deconv"].append((w, b))
    for ci, co in deconv_io[:7]:               # deconv1..deconv7 have BatchNorm
        params["deconv_bn"].append((jnp.ones((co,), jnp.float32),
                                    jnp.zeros((co,), jnp.float32)))
    return params


def prepare_generator_params(params):
    """One-time weight repack to matmul layout + bf16 (hoisted out of the
    jitted forward so it is not redone every call)."""
    return {
        "conv": [(pack_conv_w(w), b) for (w, b) in params["conv"]],
        "deconv": [(pack_deconv_w(w), b) for (w, b) in params["deconv"]],
        "conv_bn": params["conv_bn"],
        "deconv_bn": params["deconv_bn"],
    }


def generator_forward(params, x_nchw):
    x = jnp.transpose(x_nchw, (0, 2, 3, 1))    # NHWC end-to-end

    # ---- encoder: keep raw (pre-BN) outputs + folded BN (scale, shift) ----
    enc_raw, enc_aff = [], []
    h, h_scale, h_shift = x, None, None
    for i in range(8):
        w2, b = params["conv"][i]
        pre = "leaky_relu" if i > 0 else None  # conv1 has activation=False
        raw = conv4x4_s2(h, w2, b, scale=h_scale, shift=h_shift, pre_act=pre)
        if i < 7:                              # conv8 has batch_norm=False
            g, bt = params["conv_bn"][i]
            aff = bn_fold(raw, g, bt)
        else:
            aff = (None, None)
        enc_raw.append(raw)
        enc_aff.append(aff)
        h, (h_scale, h_shift) = raw, aff

    # ---- decoder with skip connections ----
    d_raw, (d_scale, d_shift) = enc_raw[7], enc_aff[7]
    for i in range(8):
        w2, b = params["deconv"][i]
        y = d_raw if d_scale is None else d_raw * d_scale + d_shift
        if i >= 1:                             # concat BN'd encoder skip
            e_raw = enc_raw[7 - i]
            e_scale, e_shift = enc_aff[7 - i]
            y = jnp.concatenate([y, e_raw * e_scale + e_shift], axis=-1)
        y = jnp.maximum(y, 0.0)                # ReLU on the deconv input
        d_raw = deconv4x4_s2(y, w2, b, post_tanh=(i == 7))
        if i < 7:
            g, bt = params["deconv_bn"][i]
            d_scale, d_shift = bn_fold(d_raw, g, bt)
            # TODO(synk): Dropout2d(0.5) on deconv1-3 applied as identity.

    return jnp.transpose(d_raw, (0, 3, 1, 2))  # back to NCHW


if __name__ == "__main__":
    key = jax.random.PRNGKey(0)
    k1, k2, k3, k4, k5, kx, kp = jax.random.split(key, 7)

    # --- unit checks of the Pallas conv / deconv paths vs XLA references ---
    def ref_conv(x, w, b):       # w: [Cout, Cin, 4, 4], NHWC tensors
        w_hwio = jnp.transpose(w, (2, 3, 1, 0))
        y = jax.lax.conv_general_dilated(
            x, w_hwio, window_strides=(2, 2), padding=((1, 1), (1, 1)),
            dimension_numbers=("NHWC", "HWIO", "NHWC"))
        return y + b

    def ref_deconv(x, w, b):     # w: [Cin, Cout, 4, 4], NHWC tensors
        w_hwio = jnp.transpose(jnp.flip(w, (2, 3)), (2, 3, 0, 1))
        y = jax.lax.conv_general_dilated(
            x, w_hwio, window_strides=(1, 1), padding=((2, 2), (2, 2)),
            lhs_dilation=(2, 2), dimension_numbers=("NHWC", "HWIO", "NHWC"))
        return y + b

    def rel_err(a, b):
        return float(jnp.linalg.norm((a - b).ravel())
                     / (jnp.linalg.norm(b.ravel()) + 1e-12))

    xc = jax.random.normal(k1, (2, 16, 16, 5), jnp.float32)
    wc = 0.1 * jax.random.normal(k2, (7, 5, 4, 4), jnp.float32)
    bc = 0.1 * jax.random.normal(k3, (7,), jnp.float32)
    got = jax.jit(conv4x4_s2)(xc, pack_conv_w(wc), bc)
    assert rel_err(got, ref_conv(xc, wc, bc)) < 2e-2

    xd = jax.random.normal(k4, (2, 8, 8, 6), jnp.float32)
    wd = 0.1 * jax.random.normal(k5, (6, 5, 4, 4), jnp.float32)
    bd = 0.1 * jax.random.normal(k3, (5,), jnp.float32)
    got = jax.jit(deconv4x4_s2)(xd, pack_deconv_w(wd), bd)
    assert rel_err(got, ref_deconv(xd, wd, bd)) < 2e-2

    # --- full generator forward (8x stride-2 encoder requires spatial >= 256) ---
    batch, input_dim, num_filters, output_dim, spatial = 1, 3, 4, 3, 256
    params = init_generator_params(kp, input_dim, num_filters, output_dim)
    prepped = prepare_generator_params(params)
    x = jax.random.normal(kx, (batch, input_dim, spatial, spatial), jnp.float32)

    fwd = jax.jit(generator_forward)
    out = jax.block_until_ready(fwd(prepped, x))

    assert out.shape == (batch, output_dim, spatial, spatial), out.shape
    assert bool(jnp.all(jnp.isfinite(out)))
    assert bool(jnp.all(jnp.abs(out) <= 1.0 + 1e-6))    # tanh output range
    print("KERNEL_OK")
</pallas_src>

<mosaic_0001>
module attributes {stable_mosaic.version = 11 : i64} {
  func.func @_mm_oneshot_kernel(%arg0: i32, %arg1: i32, %arg2: i32, %arg3: memref<176x128xbf16, #tpu.memory_space<vmem>>, %arg4: memref<128x128xbf16, #tpu.memory_space<vmem>>, %arg5: memref<176x128xbf16, #tpu.memory_space<vmem>>) attributes {dimension_semantics = [#tpu.dimension_semantics<parallel>, #tpu.dimension_semantics<parallel>, #tpu.dimension_semantics<arbitrary>], iteration_bounds = array<i64: 1, 1, 1>, scalar_prefetch = 0 : i64, scratch_operands = 0 : i64, tpu.core_type = #tpu.core_type<tc>, window_params = [{transform_indices = @transform_0, window_bounds = array<i64: 176, 128>}, {transform_indices = @transform_1, window_bounds = array<i64: 128, 128>}, {transform_indices = @transform_2, window_bounds = array<i64: 176, 128>}]} {
    %c0 = arith.constant 0 : index
    %c0_0 = arith.constant 0 : index
    %0 = vector.load %arg3[%c0, %c0_0] : memref<176x128xbf16, #tpu.memory_space<vmem>>, vector<176x128xbf16>
    %c0_1 = arith.constant 0 : index
    %c0_2 = arith.constant 0 : index
    %1 = vector.load %arg4[%c0_1, %c0_2] : memref<128x128xbf16, #tpu.memory_space<vmem>>, vector<128x128xbf16>
    %cst = arith.constant dense<0.000000e+00> : vector<176x128xf32>
    %2 = tpu.matmul %0, %1, %cst {dimension_numbers = #tpu.dot_dimension_numbers<[1], [0], [0], [1], [0, 0, 1, 1], [], []>} : vector<176x128xbf16>, vector<128x128xbf16>, vector<176x128xf32> -> vector<176x128xf32>
    %3 = arith.truncf %2 : vector<176x128xf32> to vector<176x128xbf16>
    %c0_3 = arith.constant 0 : index
    %c0_4 = arith.constant 0 : index
    %4 = vector.load %arg5[%c0_3, %c0_4] : memref<176x128xbf16, #tpu.memory_space<vmem>>, vector<176x128xbf16>
    tpu.vector_store %arg5[%c0_3, %c0_4], %3 {strides = array<i32>} : memref<176x128xbf16, #tpu.memory_space<vmem>>, vector<176x128xbf16>,
    return
  }
  func.func @transform_0(%arg0: i32, %arg1: i32, %arg2: i32) -> (i32, i32) {
    %c0_i32 = arith.constant 0 : i32
    return %arg0, %arg2 : i32, i32
  }
  func.func @transform_1(%arg0: i32, %arg1: i32, %arg2: i32) -> (i32, i32) {
    %c0_i32 = arith.constant 0 : i32
    return %arg2, %arg1 : i32, i32
  }
  func.func @transform_2(%arg0: i32, %arg1: i32, %arg2: i32) -> (i32, i32) {
    %c0_i32 = arith.constant 0 : i32
    return %arg0, %arg1 : i32, i32
  }
}

</mosaic_0001>

<llo_original>
// kernel: conv4x4_s2.1
$region0: #{conv4x4_s2.1}
  #allocation0 [shape = 'u32[]', space=smem, size = 0x4, offset = 0x4, fixed_abs, tag = 'smem constant byte address 0x4 - core index']
  #allocation1 [shape = 'u32[144,128]{1,0:T(1,128)}', space=vmem, size = 0x12000, scoped, tag = 'internal scratch']
  %s0 = inlined_call_operand.hbm [shape: bf16[176,128], index: 0, kind: input, shape index: {}]
  %s1 = inlined_call_operand.hbm [shape: bf16[128,128], index: 1, kind: input, shape index: {}]
  %s2 = inlined_call_operand.hbm [shape: bf16[176,128], index: 2, kind: output, shape index: {}]
  %s3 = sld [smem:[#allocation0]]
  $region26: #{conv4x4_s2.1} parent=0
    _
  %s5 = ssub.s32 1, %s3
  %s6 = scalar_select 0, %s5, %s3
  $region1: #{conv4x4_s2.1} parent=0
    #allocation2 [shape = 'u8[45056]{0}', space=vmem, size = 0xb000, scoped, tag = 'input window, operand 0, single buffered']
    #allocation3 [shape = 's32[1]{0}', space=sflag, size = 0x4, scoped, tag = 'scoped memory for conv4x4_s2.1']
    #allocation4 [shape = 's32[1]{0}', space=sflag, size = 0x4, scoped, tag = 'scoped memory for conv4x4_s2.1']
    #allocation5 [shape = 'u8[32768]{0}', space=vmem, size = 0x8000, scoped, tag = 'input window, operand 1, single buffered']
    #allocation6 [shape = 's32[1]{0}', space=sflag, size = 0x4, scoped, tag = 'scoped memory for conv4x4_s2.1']
    #allocation7 [shape = 'u8[45056]{0}', space=vmem, size = 0xb000, scoped, tag = 'output window, operand 0, single buffered']
    %7 = vsyncpa [#allocation3], 0
    %8 = vsyncpa [#allocation6], 0
    %9 = vsyncpa [#allocation4], 0
    // Predicated region
    $region2: #{conv4x4_s2.1} parent=1 // pred_check
      _
    $region3: #{conv4x4_s2.1} parent=1 // pred_check_branch
      %11 = sbr.rel (0) target = $region5
    $region4: #{conv4x4_s2.1} parent=1 // pred_region
      %s13 = ssub.s32 1408, 1408
      %14 = vsyncadd [#allocation3], %s13
      %s15 = sshll.u32 [#allocation2], 4
      %s16 = int_to_ptr.vmem [resolvable:$true] %s15
      %21 = dma.hbm_to_vmem [thread:$0]  %s0, 1408, %s16, [#allocation3], 64, 64, 4
    $region5: #{conv4x4_s2.1} parent=1 // pred_fallthru
      _
    // Predicated region
    $region6: #{conv4x4_s2.1} parent=1 // pred_check
      _
    $region7: #{conv4x4_s2.1} parent=1 // pred_check_branch
      %23 = sbr.rel (0) target = $region9
    $region8: #{conv4x4_s2.1} parent=1 // pred_region
      %s25 = ssub.s32 1024, 1024
      %26 = vsyncadd [#allocation6], %s25
      %s27 = sshll.u32 [#allocation5], 4
      %s28 = int_to_ptr.vmem [resolvable:$true] %s27
      %33 = dma.hbm_to_vmem [thread:$0]  %s1, 1024, %s28, [#allocation6], 64, 64, 4
    $region9: #{conv4x4_s2.1} parent=1 // pred_fallthru
      _
    // Predicated region
    $region10: #{conv4x4_s2.1} parent=1 // pred_check
      _
    $region11: #{conv4x4_s2.1} parent=1 // pred_check_branch
      %35 = sbr.rel (0) target = $region13
    $region12: #{conv4x4_s2.1} parent=1 // pred_region
      %36 = dma.done [#allocation3], 1408
    $region13: #{conv4x4_s2.1} parent=1 // pred_fallthru
      _
    // Predicated region
    $region14: #{conv4x4_s2.1} parent=1 // pred_check
      _
    $region15: #{conv4x4_s2.1} parent=1 // pred_check_branch
      %38 = sbr.rel (0) target = $region17
    $region16: #{conv4x4_s2.1} parent=1 // pred_region
      %39 = dma.done [#allocation6], 1024
    $region17: #{conv4x4_s2.1} parent=1 // pred_fallthru
      _
    %v41 = vld [vmem:[#allocation2] sm:$0xf]
    %v42 = vld [vmem:[#allocation2 + $0x4] sm:$0xf]
    %v43 = vld [vmem:[#allocation2 + $0x8] sm:$0xf]
    %v44 = vld [vmem:[#allocation2 + $0xc] sm:$0xf]
    %v45 = vld [vmem:[#allocation2 + $0x10] sm:$0xf]
    %v46 = vld [vmem:[#allocation2 + $0x14] sm:$0xf]
    %v47 = vld [vmem:[#allocation2 + $0x18] sm:$0xf]
    %v48 = vld [vmem:[#allocation2 + $0x1c] sm:$0xf]
    %v49 = vld [vmem:[#allocation2 + $0x20] sm:$0xf]
    %v50 = vld [vmem:[#allocation2 + $0x24] sm:$0xf]
    %v51 = vld [vmem:[#allocation2 + $0x28] sm:$0xf]
    %v52 = vld [vmem:[#allocation2 + $0x2c] sm:$0xf]
    %v53 = vld [vmem:[#allocation2 + $0x30] sm:$0xf]
    %v54 = vld [vmem:[#allocation2 + $0x34] sm:$0xf]
    %v55 = vld [vmem:[#allocation2 + $0x38] sm:$0xf]
    %v56 = vld [vmem:[#allocation2 + $0x3c] sm:$0xf]
    %v57 = vld [vmem:[#allocation2 + $0x40] sm:$0xf]
    %v58 = vld [vmem:[#allocation2 + $0x44] sm:$0xf]
    %v59 = vld [vmem:[#allocation2 + $0x48] sm:$0xf]
    %v60 = vld [vmem:[#allocation2 + $0x4c] sm:$0xf]
    %v61 = vld [vmem:[#allocation2 + $0x50] sm:$0xf]
    %v62 = vld [vmem:[#allocation2 + $0x54] sm:$0xf]
    %v63 = vld [vmem:[#allocation5] sm:$0xf]
    %v64 = vld [vmem:[#allocation5 + $0x4] sm:$0xf]
    %v65 = vld [vmem:[#allocation5 + $0x8] sm:$0xf]
    %v66 = vld [vmem:[#allocation5 + $0xc] sm:$0xf]
    %v67 = vld [vmem:[#allocation5 + $0x10] sm:$0xf]
    %v68 = vld [vmem:[#allocation5 + $0x14] sm:$0xf]
    %v69 = vld [vmem:[#allocation5 + $0x18] sm:$0xf]
    %v70 = vld [vmem:[#allocation5 + $0x1c] sm:$0xf]
    %v71 = vld [vmem:[#allocation5 + $0x20] sm:$0xf]
    %v72 = vld [vmem:[#allocation5 + $0x24] sm:$0xf]
    %v73 = vld [vmem:[#allocation5 + $0x28] sm:$0xf]
    %v74 = vld [vmem:[#allocation5 + $0x2c] sm:$0xf]
    %v75 = vld [vmem:[#allocation5 + $0x30] sm:$0xf]
    %v76 = vld [vmem:[#allocation5 + $0x34] sm:$0xf]
    %v77 = vld [vmem:[#allocation5 + $0x38] sm:$0xf]
    %v78 = vld [vmem:[#allocation5 + $0x3c] sm:$0xf]
    %v101 = vunpack.c.l.b16 %v41
    %v102 = vunpack.c.l.b16 %v42
    %v103 = vunpack.c.l.b16 %v43
    %v104 = vunpack.c.l.b16 %v44
    %v105 = vunpack.c.l.b16 %v45
    %v106 = vunpack.c.l.b16 %v46
    %v107 = vunpack.c.l.b16 %v47
    %v108 = vunpack.c.l.b16 %v48
    %v109 = vunpack.c.l.b16 %v49
    %v110 = vunpack.c.l.b16 %v50
    %v111 = vunpack.c.l.b16 %v51
    %v112 = vunpack.c.l.b16 %v52
    %v113 = vunpack.c.l.b16 %v53
    %v114 = vunpack.c.l.b16 %v54
    %v115 = vunpack.c.l.b16 %v55
    %v116 = vunpack.c.l.b16 %v56
    %v117 = vunpack.c.l.b16 %v57
    %v118 = vunpack.c.l.b16 %v58
    %v119 = vunpack.c.l.b16 %v59
    %v120 = vunpack.c.l.b16 %v60
    %v121 = vunpack.c.l.b16 %v61
    %v122 = vunpack.c.l.b16 %v62
    %v123 = vpack.c.b16 %v102, %v101
    %v124 = vpack.c.b16 %v104, %v103
    %v125 = vpack.c.b16 %v106, %v105
    %v126 = vpack.c.b16 %v108, %v107
    %v127 = vpack.c.b16 %v110, %v109
    %v128 = vpack.c.b16 %v112, %v111
    %v129 = vpack.c.b16 %v114, %v113
    %v130 = vpack.c.b16 %v116, %v115
    %v131 = vpack.c.b16 %v118, %v117
    %v132 = vpack.c.b16 %v120, %v119
    %v133 = vpack.c.b16 %v122, %v121
    %v161 = vunpack.c.l.b16 %v63
    %v162 = vunpack.c.l.b16 %v64
    %v163 = vunpack.c.l.b16 %v65
    %v164 = vunpack.c.l.b16 %v66
    %v165 = vunpack.c.l.b16 %v67
    %v166 = vunpack.c.l.b16 %v68
    %v167 = vunpack.c.l.b16 %v69
    %v168 = vunpack.c.l.b16 %v70
    %v169 = vunpack.c.l.b16 %v71
    %v170 = vunpack.c.l.b16 %v72
    %v171 = vunpack.c.l.b16 %v73
    %v172 = vunpack.c.l.b16 %v74
    %v173 = vunpack.c.l.b16 %v75
    %v174 = vunpack.c.l.b16 %v76
    %v175 = vunpack.c.l.b16 %v77
    %v176 = vunpack.c.l.b16 %v78
    %v177 = vpack.c.b16 %v162, %v161
    %v178 = vpack.c.b16 %v164, %v163
    %v179 = vpack.c.b16 %v166, %v165
    %v180 = vpack.c.b16 %v168, %v167
    %v181 = vpack.c.b16 %v170, %v169
    %v182 = vpack.c.b16 %v172, %v171
    %v183 = vpack.c.b16 %v174, %v173
    %v184 = vpack.c.b16 %v176, %v175
    %193 = vmatprep.subr.bf16.mxu0 0
    %194 = vmatpush1.bf16.msra.mxu0 %v177
    %195 = vmatprep.subr.bf16.mxu0 0
    %196 = vmatpush1.bf16.msra.mxu0 %v178
    %197 = vmatprep.subr.bf16.mxu0 0
    %198 = vmatpush1.bf16.msra.mxu0 %v179
    %199 = vmatprep.subr.bf16.mxu0 0
    %200 = vmatpush1.bf16.msra.mxu0 %v180
    %201 = vmatprep.subr.bf16.mxu0 0
    %202 = vmatpush1.bf16.msra.mxu0 %v181
    %203 = vmatprep.subr.bf16.mxu0 0
    %204 = vmatpush1.bf16.msra.mxu0 %v182
    %205 = vmatprep.subr.bf16.mxu0 0
    %206 = vmatpush1.bf16.msra.mxu0 %v183
    %207 = vmatprep.subr.bf16.mxu0 0
    %208 = vmatpush1.bf16.msra.mxu0 %v184
    %209 = vmatprep.subr.bf16.mxu0 0
    %210 = vmatpush1.bf16.msra.mxu0 0
    %211 = vmatprep.subr.bf16.mxu0 0
    %212 = vmatpush1.bf16.msra.mxu0 0
    %213 = vmatprep.subr.bf16.mxu0 0
    %214 = vmatpush1.bf16.msra.mxu0 0
    %215 = vmatprep.subr.bf16.mxu0 0
    %216 = vmatpush1.bf16.msra.mxu0 0
    %217 = vmatprep.subr.bf16.mxu0 0
    %218 = vmatpush1.bf16.msra.mxu0 0
    %219 = vmatprep.subr.bf16.mxu0 0
    %220 = vmatpush1.bf16.msra.mxu0 0
    %221 = vmatprep.subr.bf16.mxu0 0
    %222 = vmatpush1.bf16.msra.mxu0 0
    %223 = vmatprep.subr.bf16.mxu0 0
    %224 = vmatpush1.bf16.msra.mxu0 0
    %225 = vmatprep.mubr.bf16.mxu0 0
    %226 = vmatmul.mubr.bf16.gmra.mrb[0].mxu0 %v123
    %v227 = vpop.f32.mrb[0].mxu0
    %v228 = vadd.f32 0.0, %v227
    %v229 = vpop.f32.mrb[0].mxu0
    %v230 = vpop.f32.mrb[0].mxu0
    %v231 = vadd.f32 0.0, %v230
    %v232 = vpop.f32.mrb[0].mxu0
    %233 = vmatprep.mubr.bf16.mxu0 0
    %234 = vmatmul.mubr.bf16.gmra.mrb[0].mxu0 %v124
    %v235 = vpop.f32.mrb[0].mxu0
    %v236 = vadd.f32 0.0, %v235
    %v237 = vpop.f32.mrb[0].mxu0
    %v238 = vpop.f32.mrb[0].mxu0
    %v239 = vadd.f32 0.0, %v238
    %v240 = vpop.f32.mrb[0].mxu0
    %241 = vmatprep.mubr.bf16.mxu0 0
    %242 = vmatmul.mubr.bf16.gmra.mrb[0].mxu0 %v125
    %v243 = vpop.f32.mrb[0].mxu0
    %v244 = vadd.f32 0.0, %v243
    %v245 = vpop.f32.mrb[0].mxu0
    %v246 = vpop.f32.mrb[0].mxu0
    %v247 = vadd.f32 0.0, %v246
    %v248 = vpop.f32.mrb[0].mxu0
    %249 = vmatprep.mubr.bf16.mxu0 0
    %250 = vmatmul.mubr.bf16.gmra.mrb[0].mxu0 %v126
    %v251 = vpop.f32.mrb[0].mxu0
    %v252 = vadd.f32 0.0, %v251
    %v253 = vpop.f32.mrb[0].mxu0
    %v254 = vpop.f32.mrb[0].mxu0
    %v255 = vadd.f32 0.0, %v254
    %v256 = vpop.f32.mrb[0].mxu0
    %257 = vmatprep.mubr.bf16.mxu0 0
    %258 = vmatmul.mubr.bf16.gmra.mrb[0].mxu0 %v127
    %v259 = vpop.f32.mrb[0].mxu0
    %v260 = vadd.f32 0.0, %v259
    %v261 = vpop.f32.mrb[0].mxu0
    %v262 = vpop.f32.mrb[0].mxu0
    %v263 = vadd.f32 0.0, %v262
    %v264 = vpop.f32.mrb[0].mxu0
    %265 = vmatprep.mubr.bf16.mxu0 0
    %266 = vmatmul.mubr.bf16.gmra.mrb[0].mxu0 %v128
    %v267 = vpop.f32.mrb[0].mxu0
    %v268 = vadd.f32 0.0, %v267
    %v269 = vpop.f32.mrb[0].mxu0
    %v270 = vpop.f32.mrb[0].mxu0
    %v271 = vadd.f32 0.0, %v270
    %v272 = vpop.f32.mrb[0].mxu0
    %273 = vmatprep.mubr.bf16.mxu0 0
    %274 = vmatmul.mubr.bf16.gmra.mrb[0].mxu0 %v129
    %v275 = vpop.f32.mrb[0].mxu0
    %v276 = vadd.f32 0.0, %v275
    %v277 = vpop.f32.mrb[0].mxu0
    %v278 = vpop.f32.mrb[0].mxu0
    %v279 = vadd.f32 0.0, %v278
    %v280 = vpop.f32.mrb[0].mxu0
    %281 = vmatprep.mubr.bf16.mxu0 0
    %282 = vmatmul.mubr.bf16.gmra.mrb[0].mxu0 %v130
    %v283 = vpop.f32.mrb[0].mxu0
    %v284 = vadd.f32 0.0, %v283
    %v285 = vpop.f32.mrb[0].mxu0
    %v286 = vpop.f32.mrb[0].mxu0
    %v287 = vadd.f32 0.0, %v286
    %v288 = vpop.f32.mrb[0].mxu0
    %289 = vmatprep.mubr.bf16.mxu0 0
    %290 = vmatmul.mubr.bf16.gmra.mrb[0].mxu0 %v131
    %v291 = vpop.f32.mrb[0].mxu0
    %v292 = vadd.f32 0.0, %v291
    %v293 = vpop.f32.mrb[0].mxu0
    %v294 = vpop.f32.mrb[0].mxu0
    %v295 = vadd.f32 0.0, %v294
    %v296 = vpop.f32.mrb[0].mxu0
    %297 = vmatprep.mubr.bf16.mxu0 0
    %298 = vmatmul.mubr.bf16.gmra.mrb[0].mxu0 %v132
    %v299 = vpop.f32.mrb[0].mxu0
    %v300 = vadd.f32 0.0, %v299
    %v301 = vpop.f32.mrb[0].mxu0
    %v302 = vpop.f32.mrb[0].mxu0
    %v303 = vadd.f32 0.0, %v302
    %v304 = vpop.f32.mrb[0].mxu0
    %305 = vmatprep.mubr.bf16.mxu0 0
    %306 = vmatmul.mubr.bf16.gmra.mrb[0].mxu0 %v133
    %v307 = vpop.f32.mrb[0].mxu0
    %v308 = vadd.f32 0.0, %v307
    %v309 = vpop.f32.mrb[0].mxu0
    %v310 = vpop.f32.mrb[0].mxu0
    %v311 = vadd.f32 0.0, %v310
    %v312 = vpop.f32.mrb[0].mxu0
    %313 = vdwg.mxu0
    %v314 = vpack.c.bf16 %v231, %v228
    %v315 = vpack.c.bf16 %v239, %v236
    %v316 = vpack.c.bf16 %v247, %v244
    %v317 = vpack.c.bf16 %v255, %v252
    %v318 = vpack.c.bf16 %v263, %v260
    %v319 = vpack.c.bf16 %v271, %v268
    %v320 = vpack.c.bf16 %v279, %v276
    %v321 = vpack.c.bf16 %v287, %v284
    %v322 = vpack.c.bf16 %v295, %v292
    %v323 = vpack.c.bf16 %v303, %v300
    %v324 = vpack.c.bf16 %v311, %v308
    %v336 = vunpack.c.l.b16 %v314
    %v337 = vunpack.c.h.b16 %v314
    %v338 = vunpack.c.l.b16 %v315
    %v339 = vunpack.c.h.b16 %v315
    %v340 = vunpack.c.l.b16 %v316
    %v341 = vunpack.c.h.b16 %v316
    %v342 = vunpack.c.l.b16 %v317
    %v343 = vunpack.c.h.b16 %v317
    %v344 = vunpack.c.l.b16 %v318
    %v345 = vunpack.c.h.b16 %v318
    %v346 = vunpack.c.l.b16 %v319
    %v347 = vunpack.c.h.b16 %v319
    %v348 = vunpack.c.l.b16 %v320
    %v349 = vunpack.c.h.b16 %v320
    %v350 = vunpack.c.l.b16 %v321
    %v351 = vunpack.c.h.b16 %v321
    %v352 = vunpack.c.l.b16 %v322
    %v353 = vunpack.c.h.b16 %v322
    %v354 = vunpack.c.l.b16 %v323
    %v355 = vunpack.c.h.b16 %v323
    %v356 = vunpack.c.l.b16 %v324
    %v357 = vunpack.c.h.b16 %v324
    %v358 = vpack.c.b16 %v336, %v336
    %v359 = vpack.c.b16 %v337, %v337
    %v360 = vpack.c.b16 %v338, %v338
    %v361 = vpack.c.b16 %v339, %v339
    %v362 = vpack.c.b16 %v340, %v340
    %v363 = vpack.c.b16 %v341, %v341
    %v364 = vpack.c.b16 %v342, %v342
    %v365 = vpack.c.b16 %v343, %v343
    %v366 = vpack.c.b16 %v344, %v344
    %v367 = vpack.c.b16 %v345, %v345
    %v368 = vpack.c.b16 %v346, %v346
    %v369 = vpack.c.b16 %v347, %v347
    %v370 = vpack.c.b16 %v348, %v348
    %v371 = vpack.c.b16 %v349, %v349
    %v372 = vpack.c.b16 %v350, %v350
    %v373 = vpack.c.b16 %v351, %v351
    %v374 = vpack.c.b16 %v352, %v352
    %v375 = vpack.c.b16 %v353, %v353
    %v376 = vpack.c.b16 %v354, %v354
    %v377 = vpack.c.b16 %v355, %v355
    %v378 = vpack.c.b16 %v356, %v356
    %v379 = vpack.c.b16 %v357, %v357
    %402 = vst [vmem:[#allocation7] sm:$0xf] %v358
    %403 = vst [vmem:[#allocation7 + $0x4] sm:$0xf] %v359
    %404 = vst [vmem:[#allocation7 + $0x8] sm:$0xf] %v360
    %405 = vst [vmem:[#allocation7 + $0xc] sm:$0xf] %v361
    %406 = vst [vmem:[#allocation7 + $0x10] sm:$0xf] %v362
    %407 = vst [vmem:[#allocation7 + $0x14] sm:$0xf] %v363
    %408 = vst [vmem:[#allocation7 + $0x18] sm:$0xf] %v364
    %409 = vst [vmem:[#allocation7 + $0x1c] sm:$0xf] %v365
    %410 = vst [vmem:[#allocation7 + $0x20] sm:$0xf] %v366
    %411 = vst [vmem:[#allocation7 + $0x24] sm:$0xf] %v367
    %412 = vst [vmem:[#allocation7 + $0x28] sm:$0xf] %v368
    %413 = vst [vmem:[#allocation7 + $0x2c] sm:$0xf] %v369
    %414 = vst [vmem:[#allocation7 + $0x30] sm:$0xf] %v370
    %415 = vst [vmem:[#allocation7 + $0x34] sm:$0xf] %v371
    %416 = vst [vmem:[#allocation7 + $0x38] sm:$0xf] %v372
    %417 = vst [vmem:[#allocation7 + $0x3c] sm:$0xf] %v373
    %418 = vst [vmem:[#allocation7 + $0x40] sm:$0xf] %v374
    %419 = vst [vmem:[#allocation7 + $0x44] sm:$0xf] %v375
    %420 = vst [vmem:[#allocation7 + $0x48] sm:$0xf] %v376
    %421 = vst [vmem:[#allocation7 + $0x4c] sm:$0xf] %v377
    %422 = vst [vmem:[#allocation7 + $0x50] sm:$0xf] %v378
    %423 = vst [vmem:[#allocation7 + $0x54] sm:$0xf] %v379
    // Predicated region
    $region18: #{conv4x4_s2.1} parent=1 // pred_check
      _
    $region19: #{conv4x4_s2.1} parent=1 // pred_check_branch
      %425 = sbr.rel (0) target = $region21
    $region20: #{conv4x4_s2.1} parent=1 // pred_region
      %s427 = ssub.s32 1408, 1408
      %428 = vsyncadd [#allocation4], %s427
      %s429 = sshll.u32 [#allocation7], 4
      %s430 = int_to_ptr.vmem [resolvable:$true] %s429
      %435 = dma.vmem_to_hbm [thread:$0]  %s430, 1408, %s2, [#allocation4], 64, 64, 4
    $region21: #{conv4x4_s2.1} parent=1 // pred_fallthru
      _
    // Predicated region
    $region22: #{conv4x4_s2.1} parent=1 // pred_check
      _
    $region23: #{conv4x4_s2.1} parent=1 // pred_check_branch
      %437 = sbr.rel (0) target = $region25
    $region24: #{conv4x4_s2.1} parent=1 // pred_region
      %438 = dma.done [#allocation4], 1408
    $region25: #{conv4x4_s2.1} parent=1 // pred_fallthru
      _
    %439 = vsyncpa [#allocation3], 1
    %440 = vsyncpa [#allocation6], 1
    %441 = vsyncpa [#allocation4], 1

</llo_original>
